<compile_context>
chip_gen: v6e
topology: v6e:2x2x1
jax: 0.10.0
libtpu: 0.0.40
codegen_flags: <defaults>
</compile_context>

<pallas_src>
import jax
import jax.numpy as jnp
from jax import lax
from jax.experimental import pallas as pl
from jax.experimental.pallas import tpu as pltpu


def _flash_attn_kernel(xq_ref, xk_ref, wq_ref, wvk_ref, out_ref,
                       q_scr, m_scr, l_scr, acc_scr):
    """One (batch, q-tile, k-tile) grid step.

    xq_ref : (1, Ca, tq) bf16   query-side input tile (Ca = C + 1 ones-row)
    xk_ref : (1, Ca, tk) bf16   key/value-side input tile
    wq_ref : (C8, Ca)    bf16   query projection, bias folded into last column
    wvk_ref: (C+C8, Ca)  bf16   stacked [value; key] projection (+ biases)
    out_ref: (1, C, tq)  f32
    scratch: q (C8,tq) bf16, running max/sum (1,tq) f32, accumulator (C,tq) f32
    """
    ki = pl.program_id(2)
    C = acc_scr.shape[0]

    @pl.when(ki == 0)
    def _init():
        # Project the query tile once per (batch, q-tile); cache as bf16.
        q = jnp.dot(wq_ref[...], xq_ref[0],
                    preferred_element_type=jnp.float32)            # (C8, tq)
        q_scr[...] = q.astype(jnp.bfloat16)
        m_scr[...] = jnp.full(m_scr.shape, -jnp.inf, dtype=m_scr.dtype)
        l_scr[...] = jnp.zeros(l_scr.shape, dtype=l_scr.dtype)
        acc_scr[...] = jnp.zeros(acc_scr.shape, dtype=acc_scr.dtype)

    # Fused value+key projection for this key tile (single MXU weight push).
    vk = jnp.dot(wvk_ref[...], xk_ref[0],
                 preferred_element_type=jnp.float32)               # (C+C8, tk)
    v = vk[:C, :].astype(jnp.bfloat16)                             # (C,  tk)
    k = vk[C:, :].astype(jnp.bfloat16)                             # (C8, tk)

    # scores^T[m, n] = sum_c k[c, m] * q[c, n]  -> (tk, tq).
    # Softmax runs over the key axis m (sublanes), so v @ p below is a natural
    # (C, tk) x (tk, tq) matmul and the output stays in lane-dense (C, tq).
    s_t = lax.dot_general(k, q_scr[...], (((0,), (0,)), ((), ())),
                          preferred_element_type=jnp.float32)      # (tk, tq)

    m_prev = m_scr[...]                                            # (1, tq)
    m_new = jnp.maximum(m_prev, jnp.max(s_t, axis=0, keepdims=True))
    alpha = jnp.exp(m_prev - m_new)                                # (1, tq)
    p = jnp.exp(s_t - m_new)                                       # (tk, tq)

    l_scr[...] = alpha * l_scr[...] + jnp.sum(p, axis=0, keepdims=True)
    acc_scr[...] = alpha * acc_scr[...] + jnp.dot(
        v, p.astype(jnp.bfloat16), preferred_element_type=jnp.float32)
    m_scr[...] = m_new

    @pl.when(ki == pl.num_programs(2) - 1)
    def _finalize():
        inv_l = pl.reciprocal(l_scr[...], approx=True)             # (1, tq)
        out_ref[0] = (acc_scr[...] * inv_l).astype(out_ref.dtype)


def _choose_tile(n, target):
    """Largest tile <= target that divides n, preferring multiples of 128."""
    t = min(target, n)
    if t >= 128:
        t = (t // 128) * 128
        while t > 128 and n % t != 0:
            t -= 128
    if n % t != 0:
        t = n
    return t


def spatial_self_attention(x, wq, bq, wk, bk, wv, bv, *, tq=512, tk=512):
    """Forward of the PyTorch SpatialSelfAttention module.

    x: (B, C, H, W) f32. wq/wk: (C//8, C), wv: (C, C), biases 1-D.
    """
    B, C, H, W = x.shape
    N = H * W
    C8 = wq.shape[0]

    tq = _choose_tile(N, tq)
    tk = _choose_tile(N, tk)
    nq, nk = N // tq, N // tk

    # Fold biases into the weights via a ones-row appended to x, stack value
    # and key projections, and cast MXU operands to bf16 (f32 accumulation in
    # the kernel).
    x_aug = jnp.concatenate(
        [x.reshape(B, C, N), jnp.ones((B, 1, N), x.dtype)], axis=1)
    Ca = C + 1
    x_aug = x_aug.astype(jnp.bfloat16)
    wq_a = jnp.concatenate([wq, bq[:, None]], axis=1).astype(jnp.bfloat16)
    wvk_a = jnp.concatenate(
        [jnp.concatenate([wv, bv[:, None]], axis=1),    # value rows first ...
         jnp.concatenate([wk, bk[:, None]], axis=1)],   # ... then key rows
        axis=0).astype(jnp.bfloat16)                    # (C + C8, Ca)

    full = lambda b, qi, ki: (0, 0)
    flops = B * (2 * C8 * Ca * N                 # q projection (per q tile)
                 + 2 * (C + C8) * Ca * N * nq    # v/k projection (re-streamed)
                 + 2 * (C8 + C) * N * N)         # scores + value matmuls
    bytes_accessed = 2 * B * Ca * N * (1 + nq) + 4 * B * C * N

    out_flat = pl.pallas_call(
        _flash_attn_kernel,
        out_shape=jax.ShapeDtypeStruct((B, C, N), x.dtype),
        grid_spec=pltpu.PrefetchScalarGridSpec(
            num_scalar_prefetch=0,
            grid=(B, nq, nk),
            in_specs=[
                pl.BlockSpec((1, Ca, tq), lambda b, qi, ki: (b, 0, qi)),  # x (q)
                pl.BlockSpec((1, Ca, tk), lambda b, qi, ki: (b, 0, ki)),  # x (k/v)
                pl.BlockSpec((C8, Ca), full),                             # wq+bias
                pl.BlockSpec((C + C8, Ca), full),                         # [wv;wk]+bias
            ],
            out_specs=pl.BlockSpec((1, C, tq), lambda b, qi, ki: (b, 0, qi)),
            scratch_shapes=[
                pltpu.VMEM((C8, tq), jnp.bfloat16),   # cached q tile
                pltpu.VMEM((1, tq), jnp.float32),     # running max
                pltpu.VMEM((1, tq), jnp.float32),     # running sum
                pltpu.VMEM((C, tq), jnp.float32),     # output accumulator
            ],
        ),
        compiler_params=pltpu.CompilerParams(
            dimension_semantics=("parallel", "parallel", "arbitrary"),
            vmem_limit_bytes=48 * 1024 * 1024),
        cost_estimate=pl.CostEstimate(
            flops=flops, transcendentals=B * N * N,
            bytes_accessed=bytes_accessed),
    )(x_aug, x_aug, wq_a, wvk_a)

    return out_flat.reshape(B, C, H, W)


def _reference(x, wq, bq, wk, bk, wv, bv):
    """Pure-JAX f32 reference mirroring the PyTorch forward exactly."""
    B, C, H, W = x.shape
    N = H * W
    xf = x.reshape(B, C, N)
    q = jnp.einsum('oc,bcn->bon', wq, xf) + bq[None, :, None]
    k = jnp.einsum('oc,bcn->bon', wk, xf) + bk[None, :, None]
    v = jnp.einsum('oc,bcn->bon', wv, xf) + bv[None, :, None]
    scores = jnp.einsum('bcn,bcm->bnm', q, k)
    attn = jax.nn.softmax(scores, axis=-1)
    out = jnp.einsum('bcm,bnm->bcn', v, attn)
    return out.reshape(B, C, H, W)


if __name__ == "__main__":
    # Small, module-consistent shapes (channels must be >= 8 for channels//8).
    B, C, H, W = 2, 16, 16, 16
    C8 = C // 8

    key = jax.random.PRNGKey(0)
    kx, kwq, kbq, kwk, kbk, kwv, kbv = jax.random.split(key, 7)

    x = jax.random.normal(kx, (B, C, H, W), dtype=jnp.float32)
    bound = 1.0 / (C ** 0.5)
    wq = jax.random.uniform(kwq, (C8, C), jnp.float32, -bound, bound)
    bq = jax.random.uniform(kbq, (C8,), jnp.float32, -bound, bound)
    wk = jax.random.uniform(kwk, (C8, C), jnp.float32, -bound, bound)
    bk = jax.random.uniform(kbk, (C8,), jnp.float32, -bound, bound)
    wv = jax.random.uniform(kwv, (C, C), jnp.float32, -bound, bound)
    bv = jax.random.uniform(kbv, (C,), jnp.float32, -bound, bound)

    ref = _reference(x, wq, bq, wk, bk, wv, bv)

    # Multi-tile path: 2x2 q/k tiles -> exercises online-softmax accumulation.
    out_tiled = spatial_self_attention(x, wq, bq, wk, bk, wv, bv, tq=128, tk=128)
    out_tiled = jax.block_until_ready(out_tiled)
    # Single-tile path (tiles clamp to N).
    out_full = spatial_self_attention(x, wq, bq, wk, bk, wv, bv)
    out_full = jax.block_until_ready(out_full)

    assert out_tiled.shape == (B, C, H, W)
    for out in (out_tiled, out_full):
        err = jnp.max(jnp.abs(out - ref))
        # bf16 MXU inputs + approx reciprocal -> tolerance set accordingly.
        assert jnp.allclose(out, ref, atol=3e-2, rtol=3e-2), f"max abs err {err}"

    print("KERNEL_OK")
</pallas_src>

<mosaic_0001>
module attributes {stable_mosaic.version = 11 : i64} {
  func.func @_flash_attn_kernel(%arg0: i32, %arg1: i32, %arg2: i32, %arg3: memref<1x17x128xbf16, #tpu.memory_space<vmem>>, %arg4: memref<1x17x128xbf16, #tpu.memory_space<vmem>>, %arg5: memref<2x17xbf16, #tpu.memory_space<vmem>>, %arg6: memref<18x17xbf16, #tpu.memory_space<vmem>>, %arg7: memref<1x16x128xf32, #tpu.memory_space<vmem>>, %arg8: memref<2x128xbf16, #tpu.memory_space<vmem>>, %arg9: memref<1x128xf32, #tpu.memory_space<vmem>>, %arg10: memref<1x128xf32, #tpu.memory_space<vmem>>, %arg11: memref<16x128xf32, #tpu.memory_space<vmem>>) attributes {dimension_semantics = [#tpu.dimension_semantics<parallel>, #tpu.dimension_semantics<parallel>, #tpu.dimension_semantics<arbitrary>], iteration_bounds = array<i64: 2, 2, 2>, scalar_prefetch = 0 : i64, scratch_operands = 4 : i64, tpu.core_type = #tpu.core_type<tc>, window_params = [{transform_indices = @transform_0, window_bounds = array<i64: 1, 17, 128>}, {transform_indices = @transform_1, window_bounds = array<i64: 1, 17, 128>}, {pipeline_mode = #tpu.pipeline_mode<synchronous>, transform_indices = @transform_2, window_bounds = array<i64: 2, 17>}, {pipeline_mode = #tpu.pipeline_mode<synchronous>, transform_indices = @transform_3, window_bounds = array<i64: 18, 17>}, {transform_indices = @transform_4, window_bounds = array<i64: 1, 16, 128>}]} {
    %c0_i32 = arith.constant 0 : i32
    %0 = arith.cmpi eq, %arg2, %c0_i32 : i32
    %1 = arith.extui %0 : i1 to i32
    %c0_i32_0 = arith.constant 0 : i32
    %2 = arith.cmpi ne, %1, %c0_i32_0 : i32
    scf.if %2 {
      %c0_24 = arith.constant 0 : index
      %c0_25 = arith.constant 0 : index
      %39 = vector.load %arg5[%c0_24, %c0_25] : memref<2x17xbf16, #tpu.memory_space<vmem>>, vector<2x17xbf16>
      %c0_26 = arith.constant 0 : index
      %c0_27 = arith.constant 0 : index
      %c0_28 = arith.constant 0 : index
      %40 = vector.load %arg3[%c0_26, %c0_27, %c0_28] : memref<1x17x128xbf16, #tpu.memory_space<vmem>>, vector<1x17x128xbf16>
      %41 = vector.shape_cast %40 : vector<1x17x128xbf16> to vector<17x128xbf16>
      %cst_29 = arith.constant dense<0.000000e+00> : vector<2x128xf32>
      %42 = tpu.matmul %39, %41, %cst_29 {dimension_numbers = #tpu.dot_dimension_numbers<[1], [0], [0], [1], [0, 0, 1, 1], [], []>} : vector<2x17xbf16>, vector<17x128xbf16>, vector<2x128xf32> -> vector<2x128xf32>
      %43 = arith.truncf %42 : vector<2x128xf32> to vector<2x128xbf16>
      %c0_30 = arith.constant 0 : index
      %c0_31 = arith.constant 0 : index
      %44 = vector.load %arg8[%c0_30, %c0_31] : memref<2x128xbf16, #tpu.memory_space<vmem>>, vector<2x128xbf16>
      tpu.vector_store %arg8[%c0_30, %c0_31], %43 {strides = array<i32>} : memref<2x128xbf16, #tpu.memory_space<vmem>>, vector<2x128xbf16>,
      %cst_32 = arith.constant 0xFF800000 : f32
      %45 = vector.broadcast %cst_32 : f32 to vector<1x128xf32>
      %c0_33 = arith.constant 0 : index
      %c0_34 = arith.constant 0 : index
      %46 = vector.load %arg9[%c0_33, %c0_34] : memref<1x128xf32, #tpu.memory_space<vmem>>, vector<1x128xf32>
      tpu.vector_store %arg9[%c0_33, %c0_34], %45 {strides = array<i32>} : memref<1x128xf32, #tpu.memory_space<vmem>>, vector<1x128xf32>,
      %cst_35 = arith.constant 0.000000e+00 : f32
      %47 = vector.broadcast %cst_35 : f32 to vector<1x128xf32>
      %c0_36 = arith.constant 0 : index
      %c0_37 = arith.constant 0 : index
      %48 = vector.load %arg10[%c0_36, %c0_37] : memref<1x128xf32, #tpu.memory_space<vmem>>, vector<1x128xf32>
      tpu.vector_store %arg10[%c0_36, %c0_37], %47 {strides = array<i32>} : memref<1x128xf32, #tpu.memory_space<vmem>>, vector<1x128xf32>,
      %cst_38 = arith.constant 0.000000e+00 : f32
      %49 = vector.broadcast %cst_38 : f32 to vector<16x128xf32>
      %c0_39 = arith.constant 0 : index
      %c0_40 = arith.constant 0 : index
      %50 = vector.load %arg11[%c0_39, %c0_40] : memref<16x128xf32, #tpu.memory_space<vmem>>, vector<16x128xf32>
      tpu.vector_store %arg11[%c0_39, %c0_40], %49 {strides = array<i32>} : memref<16x128xf32, #tpu.memory_space<vmem>>, vector<16x128xf32>,
    } else {
    }
    %c0 = arith.constant 0 : index
    %c0_1 = arith.constant 0 : index
    %3 = vector.load %arg6[%c0, %c0_1] : memref<18x17xbf16, #tpu.memory_space<vmem>>, vector<18x17xbf16>
    %c0_2 = arith.constant 0 : index
    %c0_3 = arith.constant 0 : index
    %c0_4 = arith.constant 0 : index
    %4 = vector.load %arg4[%c0_2, %c0_3, %c0_4] : memref<1x17x128xbf16, #tpu.memory_space<vmem>>, vector<1x17x128xbf16>
    %5 = vector.shape_cast %4 : vector<1x17x128xbf16> to vector<17x128xbf16>
    %cst = arith.constant dense<0.000000e+00> : vector<18x128xf32>
    %6 = tpu.matmul %3, %5, %cst {dimension_numbers = #tpu.dot_dimension_numbers<[1], [0], [0], [1], [0, 0, 1, 1], [], []>} : vector<18x17xbf16>, vector<17x128xbf16>, vector<18x128xf32> -> vector<18x128xf32>
    %7 = vector.extract_strided_slice %6 {offsets = [0, 0], sizes = [16, 128], strides = [1, 1]} : vector<18x128xf32> to vector<16x128xf32>
    %8 = arith.truncf %7 : vector<16x128xf32> to vector<16x128xbf16>
    %9 = vector.extract_strided_slice %6 {offsets = [16, 0], sizes = [2, 128], strides = [1, 1]} : vector<18x128xf32> to vector<2x128xf32>
    %10 = arith.truncf %9 : vector<2x128xf32> to vector<2x128xbf16>
    %c0_5 = arith.constant 0 : index
    %c0_6 = arith.constant 0 : index
    %11 = vector.load %arg8[%c0_5, %c0_6] : memref<2x128xbf16, #tpu.memory_space<vmem>>, vector<2x128xbf16>
    %cst_7 = arith.constant dense<0.000000e+00> : vector<128x128xf32>
    %12 = tpu.matmul %10, %11, %cst_7 {dimension_numbers = #tpu.dot_dimension_numbers<[0], [0], [1], [1], [0, 1, 1, 1], [], []>} : vector<2x128xbf16>, vector<2x128xbf16>, vector<128x128xf32> -> vector<128x128xf32>
    %c0_8 = arith.constant 0 : index
    %c0_9 = arith.constant 0 : index
    %13 = vector.load %arg9[%c0_8, %c0_9] : memref<1x128xf32, #tpu.memory_space<vmem>>, vector<1x128xf32>
    %cst_10 = arith.constant dense<0xFF800000> : vector<128xf32>
    %14 = vector.multi_reduction <maximumf>, %12, %cst_10 [0] : vector<128x128xf32> to vector<128xf32>
    %15 = vector.shape_cast %14 : vector<128xf32> to vector<1x128xf32>
    %16 = arith.maximumf %13, %15 : vector<1x128xf32>
    %17 = arith.subf %13, %16 : vector<1x128xf32>
    %18 = math.exp %17 : vector<1x128xf32>
    %19 = vector.broadcast %16 : vector<1x128xf32> to vector<128x128xf32>
    %20 = arith.subf %12, %19 : vector<128x128xf32>
    %21 = math.exp %20 : vector<128x128xf32>
    %c0_11 = arith.constant 0 : index
    %c0_12 = arith.constant 0 : index
    %22 = vector.load %arg10[%c0_11, %c0_12] : memref<1x128xf32, #tpu.memory_space<vmem>>, vector<1x128xf32>
    %23 = arith.mulf %18, %22 : vector<1x128xf32>
    %cst_13 = arith.constant dense<0.000000e+00> : vector<128xf32>
    %24 = vector.multi_reduction <add>, %21, %cst_13 [0] : vector<128x128xf32> to vector<128xf32>
    %25 = vector.shape_cast %24 : vector<128xf32> to vector<1x128xf32>
    %26 = arith.addf %23, %25 : vector<1x128xf32>
    %c0_14 = arith.constant 0 : index
    %c0_15 = arith.constant 0 : index
    %27 = vector.load %arg10[%c0_14, %c0_15] : memref<1x128xf32, #tpu.memory_space<vmem>>, vector<1x128xf32>
    tpu.vector_store %arg10[%c0_14, %c0_15], %26 {strides = array<i32>} : memref<1x128xf32, #tpu.memory_space<vmem>>, vector<1x128xf32>,
    %c0_16 = arith.constant 0 : index
    %c0_17 = arith.constant 0 : index
    %28 = vector.load %arg11[%c0_16, %c0_17] : memref<16x128xf32, #tpu.memory_space<vmem>>, vector<16x128xf32>
    %29 = vector.broadcast %18 : vector<1x128xf32> to vector<16x128xf32>
    %30 = arith.mulf %29, %28 : vector<16x128xf32>
    %31 = arith.truncf %21 : vector<128x128xf32> to vector<128x128xbf16>
    %cst_18 = arith.constant dense<0.000000e+00> : vector<16x128xf32>
    %32 = tpu.matmul %8, %31, %cst_18 {dimension_numbers = #tpu.dot_dimension_numbers<[1], [0], [0], [1], [0, 0, 1, 1], [], []>} : vector<16x128xbf16>, vector<128x128xbf16>, vector<16x128xf32> -> vector<16x128xf32>
    %33 = arith.addf %30, %32 : vector<16x128xf32>
    %c0_19 = arith.constant 0 : index
    %c0_20 = arith.constant 0 : index
    %34 = vector.load %arg11[%c0_19, %c0_20] : memref<16x128xf32, #tpu.memory_space<vmem>>, vector<16x128xf32>
    tpu.vector_store %arg11[%c0_19, %c0_20], %33 {strides = array<i32>} : memref<16x128xf32, #tpu.memory_space<vmem>>, vector<16x128xf32>,
    %c0_21 = arith.constant 0 : index
    %c0_22 = arith.constant 0 : index
    %35 = vector.load %arg9[%c0_21, %c0_22] : memref<1x128xf32, #tpu.memory_space<vmem>>, vector<1x128xf32>
    tpu.vector_store %arg9[%c0_21, %c0_22], %16 {strides = array<i32>} : memref<1x128xf32, #tpu.memory_space<vmem>>, vector<1x128xf32>,
    %c1_i32 = arith.constant 1 : i32
    %36 = arith.cmpi eq, %arg2, %c1_i32 : i32
    %37 = arith.extui %36 : i1 to i32
    %c0_i32_23 = arith.constant 0 : i32
    %38 = arith.cmpi ne, %37, %c0_i32_23 : i32
    scf.if %38 {
      %c0_24 = arith.constant 0 : index
      %c0_25 = arith.constant 0 : index
      %39 = vector.load %arg10[%c0_24, %c0_25] : memref<1x128xf32, #tpu.memory_space<vmem>>, vector<1x128xf32>
      %40 = tpu.reciprocal %39 {approx = true} : vector<1x128xf32> -> vector<1x128xf32>
      %c0_26 = arith.constant 0 : index
      %c0_27 = arith.constant 0 : index
      %41 = vector.load %arg11[%c0_26, %c0_27] : memref<16x128xf32, #tpu.memory_space<vmem>>, vector<16x128xf32>
      %42 = vector.broadcast %40 : vector<1x128xf32> to vector<16x128xf32>
      %43 = arith.mulf %41, %42 : vector<16x128xf32>
      %c0_28 = arith.constant 0 : index
      %c0_29 = arith.constant 0 : index
      %c0_30 = arith.constant 0 : index
      %44 = vector.load %arg7[%c0_28, %c0_29, %c0_30] : memref<1x16x128xf32, #tpu.memory_space<vmem>>, vector<1x16x128xf32>
      %45 = vector.shape_cast %44 : vector<1x16x128xf32> to vector<16x128xf32>
      %46 = vector.shape_cast %43 : vector<16x128xf32> to vector<1x16x128xf32>
      tpu.vector_store %arg7[%c0_28, %c0_29, %c0_30], %46 {strides = array<i32>} : memref<1x16x128xf32, #tpu.memory_space<vmem>>, vector<1x16x128xf32>,
    } else {
    }
    return
  }
  func.func @transform_0(%arg0: i32, %arg1: i32, %arg2: i32) -> (i32, i32, i32) {
    %c0_i32 = arith.constant 0 : i32
    %c0_i32_0 = arith.constant 0 : i32
    return %arg0, %c0_i32, %arg1 : i32, i32, i32
  }
  func.func @transform_1(%arg0: i32, %arg1: i32, %arg2: i32) -> (i32, i32, i32) {
    %c0_i32 = arith.constant 0 : i32
    %c0_i32_0 = arith.constant 0 : i32
    return %arg0, %c0_i32, %arg2 : i32, i32, i32
  }
  func.func @transform_2(%arg0: i32, %arg1: i32, %arg2: i32) -> (i32, i32) {
    %c0_i32 = arith.constant 0 : i32
    %c0_i32_0 = arith.constant 0 : i32
    %c0_i32_1 = arith.constant 0 : i32
    return %c0_i32, %c0_i32_0 : i32, i32
  }
  func.func @transform_3(%arg0: i32, %arg1: i32, %arg2: i32) -> (i32, i32) {
    %c0_i32 = arith.constant 0 : i32
    %c0_i32_0 = arith.constant 0 : i32
    %c0_i32_1 = arith.constant 0 : i32
    return %c0_i32, %c0_i32_0 : i32, i32
  }
  func.func @transform_4(%arg0: i32, %arg1: i32, %arg2: i32) -> (i32, i32, i32) {
    %c0_i32 = arith.constant 0 : i32
    %c0_i32_0 = arith.constant 0 : i32
    return %arg0, %c0_i32, %arg1 : i32, i32, i32
  }
}

</mosaic_0001>

<llo_original>
// kernel: tpu_custom_call.1
$region0: #{tpu_custom_call.1}
  #allocation0 [shape = 'u32[]', space=smem, size = 0x4, offset = 0x4, fixed_abs, tag = 'smem constant byte address 0x4 - core index']
  #allocation1 [shape = 'u32[144,128]{1,0:T(1,128)}', space=vmem, size = 0x12000, scoped, tag = 'internal scratch']
  #allocation2 [shape = 'bf16[2,128]{1,0:T(2,128)(2,1)}', space=vmem, size = 0x200, scoped, tag = 'scratch operand']
  #allocation3 [shape = 'f32[1,128]{1,0:T(1,128)}', space=vmem, size = 0x200, scoped, tag = 'scratch operand']
  #allocation4 [shape = 'f32[1,128]{1,0:T(1,128)}', space=vmem, size = 0x200, scoped, tag = 'scratch operand']
  #allocation5 [shape = 'f32[16,128]{1,0:T(8,128)}', space=vmem, size = 0x2000, scoped, tag = 'scratch operand']
  %s0 = inlined_call_operand.vmem [shape: bf16[2,17,256], index: 0, kind: input, shape index: {}]
  %s1 = inlined_call_operand.vmem [shape: bf16[2,17,256], index: 1, kind: input, shape index: {}]
  %s2 = inlined_call_operand.vmem [shape: bf16[2,17], index: 2, kind: input, shape index: {}]
  %s3 = inlined_call_operand.vmem [shape: bf16[18,17], index: 3, kind: input, shape index: {}]
  %s4 = inlined_call_operand.hbm [shape: f32[2,16,256], index: 4, kind: output, shape index: {}]
  %s5 = sld [smem:[#allocation0]]
  $region139: #{tpu_custom_call.1} parent=0
    _
  %s7 = ssub.s32 1, %s5
  %s8 = scalar_select 0, %s7, %s5
  $region1: #{tpu_custom_call.1} parent=0
    #allocation6 [shape = 'u8[12288]{0}', space=vmem, size = 0x3000, scoped, tag = 'input window, operand 0']
    #allocation7 [shape = 'u8[12288]{0}', space=vmem, size = 0x3000, scoped, tag = 'input window, operand 1']
    #allocation8 [shape = 'u8[16384]{0}', space=vmem, size = 0x4000, scoped, tag = 'output window, operand 0']
    #allocation9 [shape = 's32[2]{0}', space=sflag, size = 0x8, scoped, tag = 'scoped memory for tpu_custom_call.1']
    %9 = vsyncpa [#allocation9], 0
    %s10 = scalar_lea.sflag [#allocation9], 1
    %11 = vsyncpa %s10, 0
    loop: start=0, step=1, limit=10
    $region2: #{tpu_custom_call.1} parent=1 // loop_pre_header
      _
    $region3: #{tpu_custom_call.1} parent=1 // loop_header
      %s13 = sphi 0, %s17
      %p14 = scmp.ge.s32.totalorder %s13, 10
      %s20 = sphi 0, %s39
      %s21 = sphi 0, %s35
      %s22 = sphi 0, %s31
      %s23 = sphi 0, %s20
      %s24 = sphi 0, %s21
      %s25 = sphi 0, %s22
      %s26 = sphi 0, %s23
      %s27 = sphi 0, %s24
      %s28 = sphi 0, %s25
      %s44 = sphi 0, %s46
      %s47 = sphi 0, %s44
      %s48 = sphi 0, %s47
      %s64 = sphi 0, %s48
      %s72 = sphi 0, %s74
      %s75 = sphi 0, %s72
      %s76 = sphi 0, %s75
      %s92 = sphi 0, %s76
      %s96 = sphi 0, %s96
      %s98 = sphi 0, %s96
      %s99 = sphi 0, %s98
      %s113 = sphi 0, %s99
      %s117 = sphi 0, %s117
      %s119 = sphi 0, %s117
      %s120 = sphi 0, %s119
      %s134 = sphi 0, %s120
      %s142 = sphi 0, %s144
      %s145 = sphi 0, %s142
      %s146 = sphi 0, %s145
      %s162 = sphi 0, %s146
    $region4: #{tpu_custom_call.1} parent=1 // loop_header_branch
      %16 = sbr.rel (%p14) target = $region8
    $region5: #{tpu_custom_call.1} parent=1 // loop_body
      %s18 = ssub.s32 %s13, 1
      %s19 = ssub.s32 %s13, 2
      %s29 = sadd.s32 1, %s22
      %p30 = scmp.ge.s32.totalorder %s29, 2
      %s31 = scalar_select %p30, 0, %s29
      %s32 = sadd.s32 1, %s21
      %s33 = scalar_select %p30, %s32, %s21
      %p34 = scmp.ge.s32.totalorder %s33, 2
      %s35 = scalar_select %p34, 0, %s33
      %s36 = sadd.s32 1, %s20
      %s37 = scalar_select %p34, %s36, %s20
      %p38 = scmp.ge.s32.totalorder %s37, 2
      %s39 = scalar_select %p38, 0, %s37
      %s40 = ssub.s32 %s20, %s39
      %s41 = ssub.s32 %s21, %s35
      %s42 = sor.u32 %s40, %s41
      %p43 = scmp.eq.s32.totalorder %s42, 0
      %s45 = sadd.s32 %s44, 1
      %s46 = scalar_select %p43, %s44, %s45
      %p49 = pneg %p43
      %p50 = scmp.eq.s32.totalorder %s13, 7
      %p51 = por %p49, %p50
      %p52 = scmp.ne.s32.totalorder %s44, %s47
      %p53 = scmp.eq.s32.totalorder %s13, 0
      %p54 = por %p52, %p53
      %p55 = scmp.ne.s32.totalorder %s44, %s47
      %p56 = scmp.eq.s32.totalorder %s18, 7
      %p57 = por %p55, %p56
      %p58 = scmp.ne.s32.totalorder %s47, %s48
      %p59 = scmp.eq.s32.totalorder %s18, 0
      %p60 = por %p58, %p59
      %p61 = scmp.ne.s32.totalorder %s47, %s48
      %p62 = scmp.eq.s32.totalorder %s19, 7
      %p63 = por %p61, %p62
      %p65 = scmp.ne.s32.totalorder %s48, %s64
      %p66 = scmp.eq.s32.totalorder %s19, 0
      %p67 = por %p65, %p66
      %s68 = ssub.s32 %s20, %s39
      %s69 = ssub.s32 %s22, %s31
      %s70 = sor.u32 %s68, %s69
      %p71 = scmp.eq.s32.totalorder %s70, 0
      %s73 = sadd.s32 %s72, 1
      %s74 = scalar_select %p71, %s72, %s73
      %p77 = pneg %p71
      %p78 = scmp.eq.s32.totalorder %s13, 7
      %p79 = por %p77, %p78
      %p80 = scmp.ne.s32.totalorder %s72, %s75
      %p81 = scmp.eq.s32.totalorder %s13, 0
      %p82 = por %p80, %p81
      %p83 = scmp.ne.s32.totalorder %s72, %s75
      %p84 = scmp.eq.s32.totalorder %s18, 7
      %p85 = por %p83, %p84
      %p86 = scmp.ne.s32.totalorder %s75, %s76
      %p87 = scmp.eq.s32.totalorder %s18, 0
      %p88 = por %p86, %p87
      %p89 = scmp.ne.s32.totalorder %s75, %s76
      %p90 = scmp.eq.s32.totalorder %s19, 7
      %p91 = por %p89, %p90
      %p93 = scmp.ne.s32.totalorder %s76, %s92
      %p94 = scmp.eq.s32.totalorder %s19, 0
      %p95 = por %p93, %p94
      %s97 = sadd.s32 %s96, 1
      %p100 = scmp.eq.s32.totalorder %s13, 7
      %p101 = scmp.ne.s32.totalorder %s96, %s98
      %p102 = scmp.eq.s32.totalorder %s13, 0
      %p103 = por %p101, %p102
      %p104 = scmp.ne.s32.totalorder %s96, %s98
      %p105 = scmp.eq.s32.totalorder %s18, 7
      %p106 = por %p104, %p105
      %p107 = scmp.ne.s32.totalorder %s98, %s99
      %p108 = scmp.eq.s32.totalorder %s18, 0
      %p109 = por %p107, %p108
      %p110 = scmp.ne.s32.totalorder %s98, %s99
      %p111 = scmp.eq.s32.totalorder %s19, 7
      %p112 = por %p110, %p111
      %p114 = scmp.ne.s32.totalorder %s99, %s113
      %p115 = scmp.eq.s32.totalorder %s19, 0
      %p116 = por %p114, %p115
      %s118 = sadd.s32 %s117, 1
      %p121 = scmp.eq.s32.totalorder %s13, 7
      %p122 = scmp.ne.s32.totalorder %s117, %s119
      %p123 = scmp.eq.s32.totalorder %s13, 0
      %p124 = por %p122, %p123
      %p125 = scmp.ne.s32.totalorder %s117, %s119
      %p126 = scmp.eq.s32.totalorder %s18, 7
      %p127 = por %p125, %p126
      %p128 = scmp.ne.s32.totalorder %s119, %s120
      %p129 = scmp.eq.s32.totalorder %s18, 0
      %p130 = por %p128, %p129
      %p131 = scmp.ne.s32.totalorder %s119, %s120
      %p132 = scmp.eq.s32.totalorder %s19, 7
      %p133 = por %p131, %p132
      %p135 = scmp.ne.s32.totalorder %s120, %s134
      %p136 = scmp.eq.s32.totalorder %s19, 0
      %p137 = por %p135, %p136
      %s138 = ssub.s32 %s20, %s39
      %s139 = ssub.s32 %s21, %s35
      %s140 = sor.u32 %s138, %s139
      %p141 = scmp.eq.s32.totalorder %s140, 0
      %s143 = sadd.s32 %s142, 1
      %s144 = scalar_select %p141, %s142, %s143
      %p147 = pneg %p141
      %p148 = scmp.eq.s32.totalorder %s13, 7
      %p149 = por %p147, %p148
      %p150 = scmp.ne.s32.totalorder %s142, %s145
      %p151 = scmp.eq.s32.totalorder %s13, 0
      %p152 = por %p150, %p151
      %p153 = scmp.ne.s32.totalorder %s142, %s145
      %p154 = scmp.eq.s32.totalorder %s18, 7
      %p155 = por %p153, %p154
      %p156 = scmp.ne.s32.totalorder %s145, %s146
      %p157 = scmp.eq.s32.totalorder %s18, 0
      %p158 = por %p156, %p157
      %p159 = scmp.ne.s32.totalorder %s145, %s146
      %p160 = scmp.eq.s32.totalorder %s19, 7
      %p161 = por %p159, %p160
      %p163 = scmp.ne.s32.totalorder %s146, %s162
      %p164 = scmp.eq.s32.totalorder %s19, 0
      %p165 = por %p163, %p164
      %p166 = scmp.le.s32.totalorder 1, %s13
      %p167 = scmp.lt.s32.totalorder %s13, 9
      %p168 = pnand %p166, %p167
      %p169 = pneg %p168
      // Predicated region
      $region9: #{tpu_custom_call.1} parent=5 // pred_check
        _
      $region10: #{tpu_custom_call.1} parent=5 // pred_check_branch
        %171 = sbr.rel (%p168) target = $region12
      $region11: #{tpu_custom_call.1} parent=5 // pred_region
        %s172 = ssub.s32 %s13, 1
        // Predicated region
        $region13: #{tpu_custom_call.1} parent=11 // pred_check
          %p173 = pneg %p109
        $region14: #{tpu_custom_call.1} parent=11 // pred_check_branch
          %175 = sbr.rel (%p173) target = $region16
        $region15: #{tpu_custom_call.1} parent=11 // pred_region
          _
        $region16: #{tpu_custom_call.1} parent=11 // pred_fallthru
          _
        // Predicated region
        $region17: #{tpu_custom_call.1} parent=11 // pred_check
          %p176 = pneg %p130
        $region18: #{tpu_custom_call.1} parent=11 // pred_check_branch
          %178 = sbr.rel (%p176) target = $region20
        $region19: #{tpu_custom_call.1} parent=11 // pred_region
          _
        $region20: #{tpu_custom_call.1} parent=11 // pred_fallthru
          _
      $region12: #{tpu_custom_call.1} parent=5 // pred_fallthru
        _
      %p179 = scmp.lt.s32.totalorder %s13, 8
      // Predicated region
      $region21: #{tpu_custom_call.1} parent=5 // pred_check
        %p180 = pneg %p179
      $region22: #{tpu_custom_call.1} parent=5 // pred_check_branch
        %182 = sbr.rel (%p180) target = $region24
      $region23: #{tpu_custom_call.1} parent=5 // pred_region
        // Predicated region
        $region25: #{tpu_custom_call.1} parent=23 // pred_check
          %p183 = pneg %p54
        $region26: #{tpu_custom_call.1} parent=23 // pred_check_branch
          %185 = sbr.rel (%p183) target = $region28
        $region27: #{tpu_custom_call.1} parent=23 // pred_region
          %s186 = sand.u32 %s44, 1
          %s187 = sand.u32 %s44, 1
          %s188 = smul.addr %s187, 12
          %s189 = scalar_lea.vmem [#allocation6], %s188
          %s190 = smul.addr %s20, 6
          %s191 = sadd.s32 %s21, %s190
          %s192 = smul.addr %s191, 4
          %s193 = scalar_lea.vmem %s0, %s192
          // Predicated region
          $region29: #{tpu_custom_call.1} parent=27 // pred_check
            _
          $region30: #{tpu_custom_call.1} parent=27 // pred_check_branch
            %195 = sbr.rel (0) target = $region32
          $region31: #{tpu_custom_call.1} parent=27 // pred_region
            // Predicated region
            $region33: #{tpu_custom_call.1} parent=31 // pred_check
              _
            $region34: #{tpu_custom_call.1} parent=31 // pred_check_branch
              %197 = sbr.rel target = $region36
            $region35: #{tpu_custom_call.1} parent=31 // pred_region
              // Predicated region
              $region48: #{tpu_custom_call.1} parent=35 // pred_check
                _
              $region49: #{tpu_custom_call.1} parent=35 // pred_check_branch
                %217 = sbr.rel (0) target = $region51
              $region50: #{tpu_custom_call.1} parent=35 // pred_region
                loop: start=0, step=1, limit=1
                $region52: #{tpu_custom_call.1} parent=50 // loop_pre_header
                  _
                $region53: #{tpu_custom_call.1} parent=50 // loop_header
                  %s219 = sphi 0, %s223
                  %p220 = scmp.ge.s32.totalorder %s219, 1
                  %s224 = sphi %s193, %s193
                  %s225 = sphi %s189, %s189
                $region54: #{tpu_custom_call.1} parent=50 // loop_header_branch
                  %222 = sbr.rel (%p220) target = $region58
                $region55: #{tpu_custom_call.1} parent=50 // loop_body
                  _
                $region56: #{tpu_custom_call.1} parent=50 // loop_footer
                  %s223 = sadd.s32 1, %s219
                $region57: #{tpu_custom_call.1} parent=50 // loop_footer_branch
                  %218 = sbr.rel target = $region53
                $region58: #{tpu_custom_call.1} parent=50 // loop_exit
                  _
                %s227 = ssub.s32 16, 1
                loop: start=0, step=1, limit=1
                $region59: #{tpu_custom_call.1} parent=50 // loop_pre_header
                  _
                $region60: #{tpu_custom_call.1} parent=50 // loop_header
                  %s229 = sphi 0, %s233
                  %p230 = scmp.ge.s32.totalorder %s229, 1
                  %s234 = sphi %s193, %s193
                  %s235 = sphi %s189, %s189
                $region61: #{tpu_custom_call.1} parent=50 // loop_header_branch
                  %232 = sbr.rel (%p230) target = $region65
                $region62: #{tpu_custom_call.1} parent=50 // loop_body
                  %v236 = vld [vmem:[%s234] sm:%s227]
                  %237 = vst [vmem:[%s235] sm:%s227] %v236
                  %v238 = vld [vmem:[%s234 + $0x8] sm:%s227]
                  %239 = vst [vmem:[%s235 + $0x4] sm:%s227] %v238
                  %v240 = vld [vmem:[%s234 + $0x10] sm:%s227]
                  %241 = vst [vmem:[%s235 + $0x8] sm:%s227] %v240
                $region63: #{tpu_custom_call.1} parent=50 // loop_footer
                  %s233 = sadd.s32 1, %s229
                $region64: #{tpu_custom_call.1} parent=50 // loop_footer_branch
                  %228 = sbr.rel target = $region60
                $region65: #{tpu_custom_call.1} parent=50 // loop_exit
                  _
              $region51: #{tpu_custom_call.1} parent=35 // pred_fallthru
                _
            $region36: #{tpu_custom_call.1} parent=31 // pred_fallthru
              _
            // Predicated region
            $region37: #{tpu_custom_call.1} parent=31 // pred_check
              _
            $region38: #{tpu_custom_call.1} parent=31 // pred_check_branch
              %199 = sbr.rel (0) target = $region40
            $region39: #{tpu_custom_call.1} parent=31 // pred_region
              %s201 = ssub.s32 16, 1
              loop: start=0, step=1, limit=1
              $region41: #{tpu_custom_call.1} parent=39 // loop_pre_header
                _
              $region42: #{tpu_custom_call.1} parent=39 // loop_header
                %s203 = sphi 0, %s207
                %p204 = scmp.ge.s32.totalorder %s203, 1
                %s208 = sphi %s193, %s193
                %s209 = sphi %s189, %s189
              $region43: #{tpu_custom_call.1} parent=39 // loop_header_branch
                %206 = sbr.rel (%p204) target = $region47
              $region44: #{tpu_custom_call.1} parent=39 // loop_body
                %v210 = vld [vmem:[%s208] sm:%s201]
                %211 = vst [vmem:[%s209] sm:%s201] %v210
                %v212 = vld [vmem:[%s208 + $0x8] sm:%s201]
                %213 = vst [vmem:[%s209 + $0x4] sm:%s201] %v212
                %v214 = vld [vmem:[%s208 + $0x10] sm:%s201]
                %215 = vst [vmem:[%s209 + $0x8] sm:%s201] %v214
              $region45: #{tpu_custom_call.1} parent=39 // loop_footer
                %s207 = sadd.s32 1, %s203
              $region46: #{tpu_custom_call.1} parent=39 // loop_footer_branch
                %202 = sbr.rel target = $region42
              $region47: #{tpu_custom_call.1} parent=39 // loop_exit
                _
            $region40: #{tpu_custom_call.1} parent=31 // pred_fallthru
              _
          $region32: #{tpu_custom_call.1} parent=27 // pred_fallthru
            _
          %242 = vnop
        $region28: #{tpu_custom_call.1} parent=23 // pred_fallthru
          _
        // Predicated region
        $region66: #{tpu_custom_call.1} parent=23 // pred_check
          %p243 = pneg %p82
        $region67: #{tpu_custom_call.1} parent=23 // pred_check_branch
          %245 = sbr.rel (%p243) target = $region69
        $region68: #{tpu_custom_call.1} parent=23 // pred_region
          %s246 = sand.u32 %s72, 1
          %s247 = sand.u32 %s72, 1
          %s248 = smul.addr %s247, 12
          %s249 = scalar_lea.vmem [#allocation7], %s248
          %s250 = smul.addr %s20, 6
          %s251 = sadd.s32 %s22, %s250
          %s252 = smul.addr %s251, 4
          %s253 = scalar_lea.vmem %s1, %s252
          // Predicated region
          $region70: #{tpu_custom_call.1} parent=68 // pred_check
            _
          $region71: #{tpu_custom_call.1} parent=68 // pred_check_branch
            %255 = sbr.rel (0) target = $region73
          $region72: #{tpu_custom_call.1} parent=68 // pred_region
            // Predicated region
            $region74: #{tpu_custom_call.1} parent=72 // pred_check
              _
            $region75: #{tpu_custom_call.1} parent=72 // pred_check_branch
              %257 = sbr.rel target = $region77
            $region76: #{tpu_custom_call.1} parent=72 // pred_region
              // Predicated region
              $region89: #{tpu_custom_call.1} parent=76 // pred_check
                _
              $region90: #{tpu_custom_call.1} parent=76 // pred_check_branch
                %277 = sbr.rel (0) target = $region92
              $region91: #{tpu_custom_call.1} parent=76 // pred_region
                loop: start=0, step=1, limit=1
                $region93: #{tpu_custom_call.1} parent=91 // loop_pre_header
                  _
                $region94: #{tpu_custom_call.1} parent=91 // loop_header
                  %s279 = sphi 0, %s283
                  %p280 = scmp.ge.s32.totalorder %s279, 1
                  %s284 = sphi %s253, %s253
                  %s285 = sphi %s249, %s249
                $region95: #{tpu_custom_call.1} parent=91 // loop_header_branch
                  %282 = sbr.rel (%p280) target = $region99
                $region96: #{tpu_custom_call.1} parent=91 // loop_body
                  _
                $region97: #{tpu_custom_call.1} parent=91 // loop_footer
                  %s283 = sadd.s32 1, %s279
                $region98: #{tpu_custom_call.1} parent=91 // loop_footer_branch
                  %278 = sbr.rel target = $region94
                $region99: #{tpu_custom_call.1} parent=91 // loop_exit
                  _
                %s287 = ssub.s32 16, 1
                loop: start=0, step=1, limit=1
                $region100: #{tpu_custom_call.1} parent=91 // loop_pre_header
                  _
                $region101: #{tpu_custom_call.1} parent=91 // loop_header
                  %s289 = sphi 0, %s293
                  %p290 = scmp.ge.s32.totalorder %s289, 1
                  %s294 = sphi %s253, %s253
                  %s295 = sphi %s249, %s249
                $region102: #{tpu_custom_call.1} parent=91 // loop_header_branch
                  %292 = sbr.rel (%p290) target = $region106
                $region103: #{tpu_custom_call.1} parent=91 // loop_body
                  %v296 = vld [vmem:[%s294] sm:%s287]
                  %297 = vst [vmem:[%s295] sm:%s287] %v296
                  %v298 = vld [vmem:[%s294 + $0x8] sm:%s287]
                  %299 = vst [vmem:[%s295 + $0x4] sm:%s287] %v298
                  %v300 = vld [vmem:[%s294 + $0x10] sm:%s287]
                  %301 = vst [vmem:[%s295 + $0x8] sm:%s287] %v300
                $region104: #{tpu_custom_call.1} parent=91 // loop_footer
                  %s293 = sadd.s32 1, %s289
                $region105: #{tpu_custom_call.1} parent=91 // loop_footer_branch
                  %288 = sbr.rel target = $region101
                $region106: #{tpu_custom_call.1} parent=91 // loop_exit
                  _
              $region92: #{tpu_custom_call.1} parent=76 // pred_fallthru
                _
            $region77: #{tpu_custom_call.1} parent=72 // pred_fallthru
              _
            // Predicated region
            $region78: #{tpu_custom_call.1} parent=72 // pred_check
              _
            $region79: #{tpu_custom_call.1} parent=72 // pred_check_branch
              %259 = sbr.rel (0) target = $region81
            $region80: #{tpu_custom_call.1} parent=72 // pred_region
              %s261 = ssub.s32 16, 1
              loop: start=0, step=1, limit=1
              $region82: #{tpu_custom_call.1} parent=80 // loop_pre_header
                _
              $region83: #{tpu_custom_call.1} parent=80 // loop_header
                %s263 = sphi 0, %s267
                %p264 = scmp.ge.s32.totalorder %s263, 1
                %s268 = sphi %s253, %s253
                %s269 = sphi %s249, %s249
              $region84: #{tpu_custom_call.1} parent=80 // loop_header_branch
                %266 = sbr.rel (%p264) target = $region88
              $region85: #{tpu_custom_call.1} parent=80 // loop_body
                %v270 = vld [vmem:[%s268] sm:%s261]
                %271 = vst [vmem:[%s269] sm:%s261] %v270
                %v272 = vld [vmem:[%s268 + $0x8] sm:%s261]
                %273 = vst [vmem:[%s269 + $0x4] sm:%s261] %v272
                %v274 = vld [vmem:[%s268 + $0x10] sm:%s261]
                %275 = vst [vmem:[%s269 + $0x8] sm:%s261] %v274
              $region86: #{tpu_custom_call.1} parent=80 // loop_footer
                %s267 = sadd.s32 1, %s263
              $region87: #{tpu_custom_call.1} parent=80 // loop_footer_branch
                %262 = sbr.rel target = $region83
              $region88: #{tpu_custom_call.1} parent=80 // loop_exit
                _
            $region81: #{tpu_custom_call.1} parent=72 // pred_fallthru
              _
          $region73: #{tpu_custom_call.1} parent=68 // pred_fallthru
            _
          %302 = vnop
        $region69: #{tpu_custom_call.1} parent=23 // pred_fallthru
          _
      $region24: #{tpu_custom_call.1} parent=5 // pred_fallthru
        _
      %p303 = scmp.le.s32.totalorder 1, %s13
      %p304 = scmp.lt.s32.totalorder %s13, 9
      %p305 = pnand %p303, %p304
      %p306 = pneg %p305
      // Predicated region
      $region107: #{tpu_custom_call.1} parent=5 // pred_check
        _
      $region108: #{tpu_custom_call.1} parent=5 // pred_check_branch
        %308 = sbr.rel (%p305) target = $region110
      $region109: #{tpu_custom_call.1} parent=5 // pred_region
        %s309 = ssub.s32 %s13, 1
        %s310 = sand.u32 %s47, 1
        %s311 = sand.u32 %s47, 1
        %s312 = smul.addr %s311, 12
        %s313 = scalar_lea.vmem [#allocation6], %s312
        // Predicated region
        $region111: #{tpu_custom_call.1} parent=109 // pred_check
          %p314 = pneg %p60
        $region112: #{tpu_custom_call.1} parent=109 // pred_check_branch
          %316 = sbr.rel (%p314) target = $region114
        $region113: #{tpu_custom_call.1} parent=109 // pred_region
          _
        $region114: #{tpu_custom_call.1} parent=109 // pred_fallthru
          _
        %s317 = sand.u32 %s75, 1
        %s318 = sand.u32 %s75, 1
        %s319 = smul.addr %s318, 12
        %s320 = scalar_lea.vmem [#allocation7], %s319
        // Predicated region
        $region115: #{tpu_custom_call.1} parent=109 // pred_check
          %p321 = pneg %p88
        $region116: #{tpu_custom_call.1} parent=109 // pred_check_branch
          %323 = sbr.rel (%p321) target = $region118
        $region117: #{tpu_custom_call.1} parent=109 // pred_region
          _
        $region118: #{tpu_custom_call.1} parent=109 // pred_fallthru
          _
        %s324 = sand.u32 %s47, 1
        %s325 = sand.u32 %s47, 1
        %s326 = smul.addr %s325, 12
        %s327 = scalar_lea.vmem [#allocation6], %s326
        %p328 = pneg %p60
        %p329 = pneg %p57
        %s330 = sand.u32 %s75, 1
        %s331 = sand.u32 %s75, 1
        %s332 = smul.addr %s331, 12
        %s333 = scalar_lea.vmem [#allocation7], %s332
        %p334 = pneg %p88
        %p335 = pneg %p85
        %p336 = pneg %p109
        %p337 = pneg %p106
        %p338 = pneg %p130
        %p339 = pneg %p127
        %p340 = pneg %p158
        %p341 = pneg %p155
        %s342 = sand.u32 %s145, 1
        %s343 = scalar_lea.sflag [#allocation9], %s342
        %s344 = sand.u32 %s145, 1
        %s345 = smul.addr %s344, 16
        %s346 = scalar_lea.vmem [#allocation8], %s345
        %p348 = scmp.eq.s32.totalorder %s25, 0
        // Predicated region
        $region119: #{tpu_custom_call.1} parent=109 // pred_check
          %p349 = pneg %p348
        $region120: #{tpu_custom_call.1} parent=109 // pred_check_branch
          %351 = sbr.rel (%p349) target = $region122
        $region121: #{tpu_custom_call.1} parent=109 // pred_region
          %v352 = vld [vmem:[%s2] sm:$0x1]
          %v353 = vld [vmem:[%s313] sm:$0xf]
          %v354 = vld [vmem:[%s313 + $0x4] sm:$0xf]
          %v355 = vld [vmem:[%s313 + $0x8] sm:$0x1]
          %v359 = vunpack.c.l.b16 %v353
          %v360 = vunpack.c.l.b16 %v354
          %v361 = vunpack.c.l.b16 %v355
          %v362 = vpack.c.b16 %v360, %v359
          %v363 = vpack.c.b16 %v361, %v361
          %vm365 = vcmask 138240
          %v367 = vsel %vm365, %v352, 0
          %vm369 = vcmask 1040384
          %v370 = vsel 0, 4294967295, 65535
          %v371 = vsel %vm369, %v370, 0
          %v373 = vand.u32 %v363, %v371
          %375 = vmatprep.subr.bf16.mxu0 0
          %376 = vmatpush1.bf16.msra.mxu0 0
          %377 = vmatprep.subr.bf16.mxu0 0
          %378 = vmatpush1.bf16.msra.mxu0 0
          %379 = vmatprep.subr.bf16.mxu0 0
          %380 = vmatpush1.bf16.msra.mxu0 0
          %381 = vmatprep.subr.bf16.mxu0 0
          %382 = vmatpush1.bf16.msra.mxu0 0
          %383 = vmatprep.subr.bf16.mxu0 0
          %384 = vmatpush1.bf16.msra.mxu0 0
          %385 = vmatprep.subr.bf16.mxu0 0
          %386 = vmatpush1.bf16.msra.mxu0 0
          %387 = vmatprep.subr.bf16.mxu0 0
          %388 = vmatpush1.bf16.msra.mxu0 %v373
          %389 = vmatprep.subr.bf16.mxu0 0
          %390 = vmatpush1.bf16.msra.mxu0 %v362
          %391 = vmatprep.subr.bf16.mxu0 0
          %392 = vmatpush2.bf16.msra.mxu0 0
          %393 = vmatprep.subr.bf16.mxu0 0
          %394 = vmatpush2.bf16.msra.mxu0 0
          %395 = vmatprep.subr.bf16.mxu0 0
          %396 = vmatpush2.bf16.msra.mxu0 0
          %397 = vmatprep.subr.bf16.mxu0 0
          %398 = vmatpush2.bf16.msra.mxu0 0
          %399 = vmatprep.subr.bf16.mxu0 0
          %400 = vmatpush2.bf16.msra.mxu0 0
          %401 = vmatprep.subr.bf16.mxu0 0
          %402 = vmatpush2.bf16.msra.mxu0 0
          %403 = vmatprep.subr.bf16.mxu0 0
          %404 = vmatpush2.bf16.msra.mxu0 0
          %405 = vmatprep.subr.bf16.mxu0 0
          %406 = vmatpush2.bf16.msra.mxu0 0
          %407 = vmatprep.mubr.bf16.mxu0 0
          %408 = vmatmul.mubr.bf16.gmra.mxu0 %v367
          %v409 = vpop.f32.mrf.mxu0
          %v410 = vadd.f32 0.0, %v409
          %v411 = vpop.f32.mrf.mxu0
          %v412 = vpop.f32.mrf.mxu0
          %v413 = vpop.f32.mrf.mxu0
          %414 = vdwg.mxu0
          %v415 = vpack.c.bf16 %v410, %v410
          %416 = vst [vmem:[#allocation2] sm:$0x1] %v415
          %417 = vst [vmem:[#allocation3] sm:$0x1] -inf
          %418 = vst [vmem:[#allocation4] sm:$0x1] 0.0
          %419 = vst [vmem:[#allocation5] sm:$0xff] 0.0
          %420 = vst [vmem:[#allocation5 + $0x8] sm:$0xff] 0.0
        $region122: #{tpu_custom_call.1} parent=109 // pred_fallthru
          _
        %v421 = vld [vmem:[%s3] sm:$0xf]
        %v422 = vld [vmem:[%s3 + $0x4] sm:$0xf]
        %v423 = vld [vmem:[%s3 + $0x8] sm:$0x1]
        %v424 = vld [vmem:[%s320] sm:$0xf]
        %v425 = vld [vmem:[%s320 + $0x4] sm:$0xf]
        %v426 = vld [vmem:[%s320 + $0x8] sm:$0x1]
        %v430 = vunpack.c.l.b16 %v421
        %v431 = vunpack.c.l.b16 %v422
        %v432 = vunpack.c.l.b16 %v423
        %v433 = vpack.c.b16 %v431, %v430
        %v434 = vpack.c.b16 %v432, %v432
        %v438 = vunpack.c.l.b16 %v424
        %v439 = vunpack.c.l.b16 %v425
        %v440 = vunpack.c.l.b16 %v426
        %v441 = vpack.c.b16 %v439, %v438
        %v442 = vpack.c.b16 %v440, %v440
        %vm444 = vcmask 138240
        %v446 = vsel %vm444, %v433, 0
        %v449 = vsel %vm444, %v434, 0
        %vm451 = vcmask 1040384
        %v452 = vsel 0, 4294967295, 65535
        %v453 = vsel %vm451, %v452, 0
        %v455 = vand.u32 %v442, %v453
        %457 = vmatprep.subr.bf16.mxu0 0
        %458 = vmatpush1.bf16.msra.mxu0 0
        %459 = vmatprep.subr.bf16.mxu0 0
        %460 = vmatpush1.bf16.msra.mxu0 0
        %461 = vmatprep.subr.bf16.mxu0 0
        %462 = vmatpush1.bf16.msra.mxu0 0
        %463 = vmatprep.subr.bf16.mxu0 0
        %464 = vmatpush1.bf16.msra.mxu0 0
        %465 = vmatprep.subr.bf16.mxu0 0
        %466 = vmatpush1.bf16.msra.mxu0 0
        %467 = vmatprep.subr.bf16.mxu0 0
        %468 = vmatpush1.bf16.msra.mxu0 0
        %469 = vmatprep.subr.bf16.mxu0 0
        %470 = vmatpush1.bf16.msra.mxu0 %v455
        %471 = vmatprep.subr.bf16.mxu0 0
        %472 = vmatpush1.bf16.msra.mxu0 %v441
        %473 = vmatprep.subr.bf16.mxu0 0
        %474 = vmatpush2.bf16.msra.mxu0 0
        %475 = vmatprep.subr.bf16.mxu0 0
        %476 = vmatpush2.bf16.msra.mxu0 0
        %477 = vmatprep.subr.bf16.mxu0 0
        %478 = vmatpush2.bf16.msra.mxu0 0
        %479 = vmatprep.subr.bf16.mxu0 0
        %480 = vmatpush2.bf16.msra.mxu0 0
        %481 = vmatprep.subr.bf16.mxu0 0
        %482 = vmatpush2.bf16.msra.mxu0 0
        %483 = vmatprep.subr.bf16.mxu0 0
        %484 = vmatpush2.bf16.msra.mxu0 0
        %485 = vmatprep.subr.bf16.mxu0 0
        %486 = vmatpush2.bf16.msra.mxu0 0
        %487 = vmatprep.subr.bf16.mxu0 0
        %488 = vmatpush2.bf16.msra.mxu0 0
        %489 = vmatprep.mubr.bf16.mxu0 0
        %490 = vmatmul.mubr.bf16.gmra.mxu0 %v446
        %v491 = vpop.f32.mrf.mxu0
        %v492 = vadd.f32 0.0, %v491
        %v493 = vpop.f32.mrf.mxu0
        %v494 = vpop.f32.mrf.mxu0
        %v495 = vadd.f32 0.0, %v494
        %v496 = vpop.f32.mrf.mxu0
        %497 = vmatprep.mubr.bf16.mxu0 0
        %498 = vmatmul.mubr.bf16.gmra.mxu0 %v449
        %v499 = vpop.f32.mrf.mxu0
        %v500 = vadd.f32 0.0, %v499
        %v501 = vpop.f32.mrf.mxu0
        %v502 = vpop.f32.mrf.mxu0
        %v503 = vpop.f32.mrf.mxu0
        %504 = vdwg.mxu0
        %v505 = vpack.c.bf16 %v495, %v492
        %v506 = vpack.c.bf16 %v500, %v500
        %v507 = vld [vmem:[#allocation2] sm:$0x1]
        %508 = vxpose.xlu0.c.b16.start [1/8] %v506, 128
        %509 = vxpose.xlu0.c.b16.cont [2/8] 0, 128
        %510 = vxpose.xlu0.c.b16.cont [3/8] 0, 128
        %511 = vxpose.xlu0.c.b16.cont [4/8] 0, 128
        %512 = vxpose.xlu0.c.b16.cont [5/8] 0, 128
        %513 = vxpose.xlu0.c.b16.cont [6/8] 0, 128
        %514 = vxpose.xlu0.c.b16.cont [7/8] 0, 128
        %515 = vxpose.xlu0.c.b16.end [8/8] 0, 128
        %v516 = vpop.trf.xlu0
        %v517 = vpop.trf.xlu0
        %v518 = vpop.trf.xlu0
        %v519 = vpop.trf.xlu0
        %v520 = vpop.trf.xlu0
        %v521 = vpop.trf.xlu0
        %v522 = vpop.trf.xlu0
        %v523 = vpop.trf.xlu0
        %vm524 = vcmask 15360
        %v526 = vsel %vm524, %v516, 0
        %v529 = vsel %vm524, %v517, 0
        %v532 = vsel %vm524, %v518, 0
        %v535 = vsel %vm524, %v519, 0
        %v538 = vsel %vm524, %v520, 0
        %v541 = vsel %vm524, %v521, 0
        %v544 = vsel %vm524, %v522, 0
        %v547 = vsel %vm524, %v523, 0
        %v550 = vsel %vm451, %v507, 0
        %552 = vmatprep.subr.bf16.mxu0 0
        %553 = vmatpush1.bf16.msra.mxu0 0
        %554 = vmatprep.subr.bf16.mxu0 0
        %555 = vmatpush1.bf16.msra.mxu0 0
        %556 = vmatprep.subr.bf16.mxu0 0
        %557 = vmatpush1.bf16.msra.mxu0 0
        %558 = vmatprep.subr.bf16.mxu0 0
        %559 = vmatpush1.bf16.msra.mxu0 0
        %560 = vmatprep.subr.bf16.mxu0 0
        %561 = vmatpush1.bf16.msra.mxu0 0
        %562 = vmatprep.subr.bf16.mxu0 0
        %563 = vmatpush1.bf16.msra.mxu0 0
        %564 = vmatprep.subr.bf16.mxu0 0
        %565 = vmatpush1.bf16.msra.mxu0 0
        %566 = vmatprep.subr.bf16.mxu0 0
        %567 = vmatpush1.bf16.msra.mxu0 %v550
        %568 = vmatprep.subr.bf16.mxu0 0
        %569 = vmatpush2.bf16.msra.mxu0 0
        %570 = vmatprep.subr.bf16.mxu0 0
        %571 = vmatpush2.bf16.msra.mxu0 0
        %572 = vmatprep.subr.bf16.mxu0 0
        %573 = vmatpush2.bf16.msra.mxu0 0
        %574 = vmatprep.subr.bf16.mxu0 0
        %575 = vmatpush2.bf16.msra.mxu0 0
        %576 = vmatprep.subr.bf16.mxu0 0
        %577 = vmatpush2.bf16.msra.mxu0 0
        %578 = vmatprep.subr.bf16.mxu0 0
        %579 = vmatpush2.bf16.msra.mxu0 0
        %580 = vmatprep.subr.bf16.mxu0 0
        %581 = vmatpush2.bf16.msra.mxu0 0
        %582 = vmatprep.subr.bf16.mxu0 0
        %583 = vmatpush2.bf16.msra.mxu0 0
        %584 = vmatprep.mubr.bf16.mxu0 0
        %585 = vmatmul.mubr.bf16.gmra.mxu0 %v526
        %v586 = vpop.f32.mrf.mxu0
        %v587 = vadd.f32 0.0, %v586
        %v588 = vpop.f32.mrf.mxu0
        %v589 = vpop.f32.mrf.mxu0
        %v590 = vadd.f32 0.0, %v589
        %v591 = vpop.f32.mrf.mxu0
        %592 = vmatprep.mubr.bf16.mxu0 0
        %593 = vmatmul.mubr.bf16.gmra.mxu0 %v529
        %v594 = vpop.f32.mrf.mxu0
        %v595 = vadd.f32 0.0, %v594
        %v596 = vpop.f32.mrf.mxu0
        %v597 = vpop.f32.mrf.mxu0
        %v598 = vadd.f32 0.0, %v597
        %v599 = vpop.f32.mrf.mxu0
        %600 = vmatprep.mubr.bf16.mxu0 0
        %601 = vmatmul.mubr.bf16.gmra.mxu0 %v532
        %v602 = vpop.f32.mrf.mxu0
        %v603 = vadd.f32 0.0, %v602
        %v604 = vpop.f32.mrf.mxu0
        %v605 = vpop.f32.mrf.mxu0
        %v606 = vadd.f32 0.0, %v605
        %v607 = vpop.f32.mrf.mxu0
        %608 = vmatprep.mubr.bf16.mxu0 0
        %609 = vmatmul.mubr.bf16.gmra.mxu0 %v535
        %v610 = vpop.f32.mrf.mxu0
        %v611 = vadd.f32 0.0, %v610
        %v612 = vpop.f32.mrf.mxu0
        %v613 = vpop.f32.mrf.mxu0
        %v614 = vadd.f32 0.0, %v613
        %v615 = vpop.f32.mrf.mxu0
        %616 = vmatprep.mubr.bf16.mxu0 0
        %617 = vmatmul.mubr.bf16.gmra.mxu0 %v538
        %v618 = vpop.f32.mrf.mxu0
        %v619 = vadd.f32 0.0, %v618
        %v620 = vpop.f32.mrf.mxu0
        %v621 = vpop.f32.mrf.mxu0
        %v622 = vadd.f32 0.0, %v621
        %v623 = vpop.f32.mrf.mxu0
        %624 = vmatprep.mubr.bf16.mxu0 0
        %625 = vmatmul.mubr.bf16.gmra.mxu0 %v541
        %v626 = vpop.f32.mrf.mxu0
        %v627 = vadd.f32 0.0, %v626
        %v628 = vpop.f32.mrf.mxu0
        %v629 = vpop.f32.mrf.mxu0
        %v630 = vadd.f32 0.0, %v629
        %v631 = vpop.f32.mrf.mxu0
        %632 = vmatprep.mubr.bf16.mxu0 0
        %633 = vmatmul.mubr.bf16.gmra.mxu0 %v544
        %v634 = vpop.f32.mrf.mxu0
        %v635 = vadd.f32 0.0, %v634
        %v636 = vpop.f32.mrf.mxu0
        %v637 = vpop.f32.mrf.mxu0
        %v638 = vadd.f32 0.0, %v637
        %v639 = vpop.f32.mrf.mxu0
        %640 = vmatprep.mubr.bf16.mxu0 0
        %641 = vmatmul.mubr.bf16.gmra.mxu0 %v547
        %v642 = vpop.f32.mrf.mxu0
        %v643 = vadd.f32 0.0, %v642
        %v644 = vpop.f32.mrf.mxu0
        %v645 = vpop.f32.mrf.mxu0
        %v646 = vadd.f32 0.0, %v645
        %v647 = vpop.f32.mrf.mxu0
        %648 = vdwg.mxu0
        %v649 = vld [vmem:[#allocation3] sm:$0x1]
        %v650 = vmax.f32 %v587, %v603
        %v651 = vmax.f32 %v590, %v606
        %v652 = vmax.f32 %v595, %v611
        %v653 = vmax.f32 %v598, %v614
        %v654 = vmax.f32 %v650, %v619
        %v655 = vmax.f32 %v651, %v622
        %v656 = vmax.f32 %v652, %v627
        %v657 = vmax.f32 %v653, %v630
        %v658 = vmax.f32 %v654, %v635
        %v659 = vmax.f32 %v655, %v638
        %v660 = vmax.f32 %v656, %v643
        %v661 = vmax.f32 %v657, %v646
        %v662 = vmax.f32 %v658, %v659
        %v663 = vmax.f32 %v660, %v661
        %v664 = vmax.f32 %v662, %v663
        %v665 = vrot.slane %v664, 4
        %v666 = vmax.f32 %v664, %v665
        %v667 = vrot.slane %v666, 2
        %v668 = vmax.f32 %v666, %v667
        %v669 = vrot.slane %v668, 1
        %v670 = vmax.f32 %v668, %v669
        %v671 = vmax.f32 %v649, %v670
        %v672 = vsub.f32 %v649, %v671
        %v673 = vmul.f32 %v672, 1.442695
        %v674 = vpow.pop %v673
        %v676 = vlaneseq
        %v677 = vshrl.u32 %v676, 7
        %v678 = vsub.s32 0, %v677
        %v679 = vrot.slane %v671, %v678
        %v681 = vsub.f32 %v587, %v679
        %v682 = vsub.f32 %v590, %v679
        %v683 = vsub.f32 %v595, %v679
        %v684 = vsub.f32 %v598, %v679
        %v685 = vsub.f32 %v603, %v679
        %v686 = vsub.f32 %v606, %v679
        %v687 = vsub.f32 %v611, %v679
        %v688 = vsub.f32 %v614, %v679
        %v689 = vsub.f32 %v619, %v679
        %v690 = vsub.f32 %v622, %v679
        %v691 = vsub.f32 %v627, %v679
        %v692 = vsub.f32 %v630, %v679
        %v693 = vsub.f32 %v635, %v679
        %v694 = vsub.f32 %v638, %v679
        %v695 = vsub.f32 %v643, %v679
        %v696 = vsub.f32 %v646, %v679
        %v697 = vmul.f32 %v681, 1.442695
        %v698 = vpow.pop %v697
        %v699 = vmul.f32 %v682, 1.442695
        %v700 = vpow.pop %v699
        %v701 = vmul.f32 %v683, 1.442695
        %v702 = vpow.pop %v701
        %v703 = vmul.f32 %v684, 1.442695
        %v704 = vpow.pop %v703
        %v705 = vmul.f32 %v685, 1.442695
        %v706 = vpow.pop %v705
        %v707 = vmul.f32 %v686, 1.442695
        %v708 = vpow.pop %v707
        %v709 = vmul.f32 %v687, 1.442695
        %v710 = vpow.pop %v709
        %v711 = vmul.f32 %v688, 1.442695
        %v712 = vpow.pop %v711
        %v713 = vmul.f32 %v689, 1.442695
        %v714 = vpow.pop %v713
        %v715 = vmul.f32 %v690, 1.442695
        %v716 = vpow.pop %v715
        %v717 = vmul.f32 %v691, 1.442695
        %v718 = vpow.pop %v717
        %v719 = vmul.f32 %v692, 1.442695
        %v720 = vpow.pop %v719
        %v721 = vmul.f32 %v693, 1.442695
        %v722 = vpow.pop %v721
        %v723 = vmul.f32 %v694, 1.442695
        %v724 = vpow.pop %v723
        %v725 = vmul.f32 %v695, 1.442695
        %v726 = vpow.pop %v725
        %v727 = vmul.f32 %v696, 1.442695
        %v728 = vpow.pop %v727
        %v729 = vld [vmem:[#allocation4] sm:$0x1]
        %v730 = vmul.f32 %v674, %v729
        %v731 = vadd.f32 %v698, %v700
        %v732 = vadd.f32 %v731, %v702
        %v733 = vadd.f32 %v732, %v704
        %v734 = vadd.f32 %v733, %v706
        %v735 = vadd.f32 %v734, %v708
        %v736 = vadd.f32 %v735, %v710
        %v737 = vadd.f32 %v736, %v712
        %v738 = vadd.f32 %v737, %v714
        %v739 = vadd.f32 %v738, %v716
        %v740 = vadd.f32 %v739, %v718
        %v741 = vadd.f32 %v740, %v720
        %v742 = vadd.f32 %v741, %v722
        %v743 = vadd.f32 %v742, %v724
        %v744 = vadd.f32 %v743, %v726
        %v745 = vadd.f32 %v744, %v728
        %v746 = vrot.slane %v745, 4
        %v747 = vadd.f32 %v745, %v746
        %v748 = vrot.slane %v747, 2
        %v749 = vadd.f32 %v747, %v748
        %v750 = vrot.slane %v749, 1
        %v751 = vadd.f32 %v749, %v750
        %v752 = vadd.f32 %v730, %v751
        %753 = vst [vmem:[#allocation4] sm:$0x1] %v752
        %v754 = vld [vmem:[#allocation5] sm:$0xff]
        %v755 = vld [vmem:[#allocation5 + $0x8] sm:$0xff]
        %v757 = vlaneseq
        %v758 = vshrl.u32 %v757, 7
        %v759 = vsub.s32 0, %v758
        %v760 = vrot.slane %v674, %v759
        %v762 = vmul.f32 %v760, %v754
        %v763 = vmul.f32 %v760, %v755
        %v764 = vpack.c.bf16 %v700, %v698
        %v765 = vpack.c.bf16 %v704, %v702
        %v766 = vpack.c.bf16 %v708, %v706
        %v767 = vpack.c.bf16 %v712, %v710
        %v768 = vpack.c.bf16 %v716, %v714
        %v769 = vpack.c.bf16 %v720, %v718
        %v770 = vpack.c.bf16 %v724, %v722
        %v771 = vpack.c.bf16 %v728, %v726
        %772 = vmatprep.subr.bf16.mxu0 0
        %773 = vmatpush1.bf16.msra.mxu0 %v771
        %774 = vmatprep.subr.bf16.mxu0 0
        %775 = vmatpush1.bf16.msra.mxu0 %v770
        %776 = vmatprep.subr.bf16.mxu0 0
        %777 = vmatpush1.bf16.msra.mxu0 %v769
        %778 = vmatprep.subr.bf16.mxu0 0
        %779 = vmatpush1.bf16.msra.mxu0 %v768
        %780 = vmatprep.subr.bf16.mxu0 0
        %781 = vmatpush1.bf16.msra.mxu0 %v767
        %782 = vmatprep.subr.bf16.mxu0 0
        %783 = vmatpush1.bf16.msra.mxu0 %v766
        %784 = vmatprep.subr.bf16.mxu0 0
        %785 = vmatpush1.bf16.msra.mxu0 %v765
        %786 = vmatprep.subr.bf16.mxu0 0
        %787 = vmatpush1.bf16.msra.mxu0 %v764
        %788 = vmatprep.subr.bf16.mxu0 0
        %789 = vmatpush2.bf16.msra.mxu0 0
        %790 = vmatprep.subr.bf16.mxu0 0
        %791 = vmatpush2.bf16.msra.mxu0 0
        %792 = vmatprep.subr.bf16.mxu0 0
        %793 = vmatpush2.bf16.msra.mxu0 0
        %794 = vmatprep.subr.bf16.mxu0 0
        %795 = vmatpush2.bf16.msra.mxu0 0
        %796 = vmatprep.subr.bf16.mxu0 0
        %797 = vmatpush2.bf16.msra.mxu0 0
        %798 = vmatprep.subr.bf16.mxu0 0
        %799 = vmatpush2.bf16.msra.mxu0 0
        %800 = vmatprep.subr.bf16.mxu0 0
        %801 = vmatpush2.bf16.msra.mxu0 0
        %802 = vmatprep.subr.bf16.mxu0 0
        %803 = vmatpush2.bf16.msra.mxu0 0
        %804 = vmatprep.mubr.bf16.mxu0 0
        %805 = vmatmul.mubr.bf16.gmra.mxu0 %v505
        %v806 = vpop.f32.mrf.mxu0
        %v807 = vadd.f32 0.0, %v806
        %v808 = vpop.f32.mrf.mxu0
        %v809 = vpop.f32.mrf.mxu0
        %v810 = vadd.f32 0.0, %v809
        %v811 = vpop.f32.mrf.mxu0
        %812 = vdwg.mxu0
        %v813 = vadd.f32 %v762, %v807
        %v814 = vadd.f32 %v763, %v810
        %815 = vst [vmem:[#allocation5] sm:$0xff] %v813
        %816 = vst [vmem:[#allocation5 + $0x8] sm:$0xff] %v814
        %817 = vst [vmem:[#allocation3] sm:$0x1] %v671
        %p818 = scmp.eq.s32.totalorder %s25, 1
        // Predicated region
        $region123: #{tpu_custom_call.1} parent=109 // pred_check
          %p819 = pneg %p818
        $region124: #{tpu_custom_call.1} parent=109 // pred_check_branch
          %821 = sbr.rel (%p819) target = $region126
        $region125: #{tpu_custom_call.1} parent=109 // pred_region
          %v822 = vld [vmem:[#allocation4] sm:$0x1]
          %v823 = vrcp.pop %v822
          %v824 = vld [vmem:[#allocation5] sm:$0xff]
          %v825 = vld [vmem:[#allocation5 + $0x8] sm:$0xff]
          %v827 = vlaneseq
          %v828 = vshrl.u32 %v827, 7
          %v829 = vsub.s32 0, %v828
          %v830 = vrot.slane %v823, %v829
          %v832 = vmul.f32 %v824, %v830
          %v833 = vmul.f32 %v825, %v830
          %834 = vst [vmem:[%s346] sm:$0xff] %v832
          %835 = vst [vmem:[%s346 + $0x8] sm:$0xff] %v833
        $region126: #{tpu_custom_call.1} parent=109 // pred_fallthru
          _
        %s836 = sand.u32 %s145, 1
        %s837 = scalar_lea.sflag [#allocation9], %s836
        %s838 = sand.u32 %s145, 1
        %s839 = smul.addr %s838, 16
        %s840 = scalar_lea.vmem [#allocation8], %s839
        // Predicated region
        $region127: #{tpu_custom_call.1} parent=109 // pred_check
          %p841 = pneg %p155
        $region128: #{tpu_custom_call.1} parent=109 // pred_check_branch
          %843 = sbr.rel (%p841) target = $region130
        $region129: #{tpu_custom_call.1} parent=109 // pred_region
          %s845 = ssub.s32 256, 256
          %846 = vsyncadd %s837, %s845
          %s847 = smul.addr %s23, 4
          %s848 = sadd.s32 %s24, %s847
          %s849 = smul.addr %s848, 128
          %s850 = scalar_lea.hbm %s4, %s849
          %s851 = sshll.u32 %s840, 4
          %s852 = int_to_ptr.vmem [resolvable:$true] %s851
          %857 = dma.vmem_to_hbm [thread:$0]  %s852, 256, %s850, %s837, 128, 256, 8
        $region130: #{tpu_custom_call.1} parent=109 // pred_fallthru
          _
      $region110: #{tpu_custom_call.1} parent=5 // pred_fallthru
        _
      %p858 = scmp.le.s32.totalorder 2, %s13
      // Predicated region
      $region131: #{tpu_custom_call.1} parent=5 // pred_check
        %p859 = pneg %p858
      $region132: #{tpu_custom_call.1} parent=5 // pred_check_branch
        %861 = sbr.rel (%p859) target = $region134
      $region133: #{tpu_custom_call.1} parent=5 // pred_region
        %s862 = ssub.s32 %s13, 2
        // Predicated region
        $region135: #{tpu_custom_call.1} parent=133 // pred_check
          %p863 = pneg %p161
        $region136: #{tpu_custom_call.1} parent=133 // pred_check_branch
          %865 = sbr.rel (%p863) target = $region138
        $region137: #{tpu_custom_call.1} parent=133 // pred_region
          %s866 = sand.u32 %s146, 1
          %s867 = scalar_lea.sflag [#allocation9], %s866
          %s868 = sand.u32 %s146, 1
          %s869 = smul.addr %s868, 16
          %s870 = scalar_lea.vmem [#allocation8], %s869
          %871 = dma.done %s867, 256
        $region138: #{tpu_custom_call.1} parent=133 // pred_fallthru
          _
      $region134: #{tpu_custom_call.1} parent=5 // pred_fallthru
        _
    $region6: #{tpu_custom_call.1} parent=1 // loop_footer
      %s17 = sadd.s32 1, %s13
    $region7: #{tpu_custom_call.1} parent=1 // loop_footer_branch
      %12 = sbr.rel target = $region3
    $region8: #{tpu_custom_call.1} parent=1 // loop_exit
      _
    %872 = vsyncpa [#allocation9], 1
    %s873 = scalar_lea.sflag [#allocation9], 1
    %874 = vsyncpa %s873, 1

</llo_original>
